<compile_context>
chip_gen: v5e
topology: v5e:2x2
jax: 0.10.0
libtpu: 0.0.40
codegen_flags: <defaults>
</compile_context>

<pallas_src>
import functools

import jax
import jax.numpy as jnp
from jax.experimental import pallas as pl
from jax.experimental.pallas import tpu as pltpu


def _round_up(x, m):
    return (x + m - 1) // m * m


def _bf16_eup_ok():
    """bf16 transcendental (EUP) path exists on v6e/v7x; use f32 elsewhere."""
    try:
        kind = jax.devices()[0].device_kind.lower()
    except Exception:
        return False
    return ("v6" in kind) or ("v7" in kind)


def _actor_kernel(ma_ref, s_ref, w1_ref, b1_ref, w2_ref, b2_ref,
                  w3_ref, b3_ref, out_ref, *, bf16_tanh):
    max_action = ma_ref[0, 0]                      # SMEM scalar

    # Layer 1: (Bt, S) bf16 @ (S, H1) bf16 -> f32 acc, +b1, relu.
    x = s_ref[...].astype(jnp.bfloat16)
    h1 = jnp.dot(x, w1_ref[...], preferred_element_type=jnp.float32)
    h1 = jnp.maximum(h1 + b1_ref[...], 0.0)

    # Layer 2
    h2 = jnp.dot(h1.astype(jnp.bfloat16), w2_ref[...],
                 preferred_element_type=jnp.float32)
    h2 = jnp.maximum(h2 + b2_ref[...], 0.0)

    # Layer 3 + scaled tanh
    h3 = jnp.dot(h2.astype(jnp.bfloat16), w3_ref[...],
                 preferred_element_type=jnp.float32)
    pre = h3 + b3_ref[...]
    if bf16_tanh:
        act = jnp.tanh(pre.astype(jnp.bfloat16)).astype(jnp.float32)
    else:
        act = jnp.tanh(pre)
    out_ref[...] = (max_action * act).astype(out_ref.dtype)


def init_actor_params(key, state_dim, action_dim):
    """nn.Linear-style init (uniform +/- 1/sqrt(fan_in)); weights stored (in, out)."""
    dims = [(state_dim, 400), (400, 300), (300, action_dim)]
    params = {}
    for i, (fan_in, fan_out) in enumerate(dims, start=1):
        key, kw, kb = jax.random.split(key, 3)
        bound = 1.0 / (fan_in ** 0.5)
        params[f"w{i}"] = jax.random.uniform(
            kw, (fan_in, fan_out), jnp.float32, minval=-bound, maxval=bound)
        params[f"b{i}"] = jax.random.uniform(
            kb, (1, fan_out), jnp.float32, minval=-bound, maxval=bound)
    return params


def prepare_params(params):
    """Zero-pad hidden/output dims to lane-aligned sizes, cast weights to bf16.

    Zero-padded columns/rows keep the padded hidden/action lanes exactly 0
    through ReLU and tanh, so the math is unchanged after the final slice.
    Layer-1's contraction dim (state_dim) is deliberately left unpadded.
    """
    s_dim, h1 = params["w1"].shape
    _, h2 = params["w2"].shape
    _, a_dim = params["w3"].shape
    H1 = _round_up(h1, 128)          # 400 -> 512
    H2 = _round_up(h2, 128)          # 300 -> 384 (3x128; saves MXU work on v5e)
    A = _round_up(a_dim, 128)        # lane-dense output

    def pad2(x, r, c):
        return jnp.pad(x, ((0, r - x.shape[0]), (0, c - x.shape[1])))

    return {
        "w1": pad2(params["w1"], s_dim, H1).astype(jnp.bfloat16),
        "b1": pad2(params["b1"], 1, H1),
        "w2": pad2(params["w2"], H1, H2).astype(jnp.bfloat16),
        "b2": pad2(params["b2"], 1, H2),
        "w3": pad2(params["w3"], H2, A).astype(jnp.bfloat16),
        "b3": pad2(params["b3"], 1, A),
    }


def _batch_tiling(B):
    """Pick (block_b, grid): large tiles (<=1024 rows), bounded padding waste,
    and >=2 tiles when feasible so the parallel axis shards across v7x's 2 TCs."""
    B16 = _round_up(max(B, 1), 16)       # bf16 sublane packing
    if B16 <= 32:
        return B16, 1                    # tiny batch: single small tile
    grid = max(2, pl.cdiv(B16, 1024))    # cap tile at 1024 rows (fits v5e VMEM)
    block_b = _round_up(pl.cdiv(B16, grid), 16)
    grid = pl.cdiv(B16, block_b)
    return block_b, grid


def actor_forward(state, pparams, max_action, action_dim):
    """state: (B, state_dim) f32. pparams: output of prepare_params."""
    B, s_dim = state.shape
    A = pparams["w3"].shape[1]

    block_b, grid = _batch_tiling(B)
    B_pad = block_b * grid
    if B_pad > B:
        # Row-only padding; no feature pad / dtype cast here (done in-kernel).
        state = jnp.pad(state, ((0, B_pad - B), (0, 0)))

    ma = jnp.full((1, 1), max_action, jnp.float32)
    const = lambda shape: pl.BlockSpec(shape, lambda i: (0, 0))
    kernel = functools.partial(_actor_kernel, bf16_tanh=_bf16_eup_ok())

    out = pl.pallas_call(
        kernel,
        out_shape=jax.ShapeDtypeStruct((B_pad, A), jnp.bfloat16),
        grid_spec=pltpu.PrefetchScalarGridSpec(
            num_scalar_prefetch=0,
            grid=(grid,),
            in_specs=[
                pl.BlockSpec(memory_space=pltpu.MemorySpace.SMEM),    # max_action
                pl.BlockSpec((block_b, s_dim), lambda i: (i, 0)),     # state tile
                const(pparams["w1"].shape), const(pparams["b1"].shape),
                const(pparams["w2"].shape), const(pparams["b2"].shape),
                const(pparams["w3"].shape), const(pparams["b3"].shape),
            ],
            out_specs=pl.BlockSpec((block_b, A), lambda i: (i, 0)),
        ),
        compiler_params=pltpu.CompilerParams(
            dimension_semantics=("parallel",)),
    )(ma, state, pparams["w1"], pparams["b1"], pparams["w2"], pparams["b2"],
      pparams["w3"], pparams["b3"])

    return out[:B, :action_dim].astype(jnp.float32)


def actor_reference(state, params, max_action):
    """Pure-JAX reference mimicking the kernel's bf16-weight/activation path."""
    def dot_bf16(x, w):
        return jnp.dot(x.astype(jnp.bfloat16), w.astype(jnp.bfloat16),
                       preferred_element_type=jnp.float32)
    h1 = jnp.maximum(dot_bf16(state, params["w1"]) + params["b1"], 0.0)
    h2 = jnp.maximum(dot_bf16(h1, params["w2"]) + params["b2"], 0.0)
    return max_action * jnp.tanh(dot_bf16(h2, params["w3"]) + params["b3"])


if __name__ == "__main__":
    key = jax.random.PRNGKey(0)
    batch, state_dim, action_dim, max_action = 2, 16, 4, 2.0

    key, ks = jax.random.split(key)
    state = jax.random.normal(ks, (batch, state_dim), jnp.float32)
    params = init_actor_params(key, state_dim, action_dim)
    pparams = prepare_params(params)

    # jit with max_action as a traced argument (SMEM scalar makes this safe).
    fwd = jax.jit(actor_forward, static_argnums=(3,))
    out = fwd(state, pparams, max_action, action_dim)
    out = jax.block_until_ready(out)

    ref = actor_reference(state, params, max_action)
    assert out.shape == (batch, action_dim)
    # Tolerance covers bf16 matmul inputs, bf16 output store, and (on v6e/v7x)
    # the bf16 tanh epilogue; output magnitude is bounded by max_action.
    assert jnp.allclose(out, ref, atol=5e-2, rtol=5e-2), "mismatch vs reference"

    print("KERNEL_OK")
</pallas_src>

<mosaic_0001>
module attributes {stable_mosaic.version = 11 : i64} {
  func.func @_actor_kernel(%arg0: i32, %arg1: memref<1x1xf32, #tpu.memory_space<smem>>, %arg2: memref<16x16xf32, #tpu.memory_space<vmem>>, %arg3: memref<16x512xbf16, #tpu.memory_space<vmem>>, %arg4: memref<1x512xf32, #tpu.memory_space<vmem>>, %arg5: memref<512x384xbf16, #tpu.memory_space<vmem>>, %arg6: memref<1x384xf32, #tpu.memory_space<vmem>>, %arg7: memref<384x128xbf16, #tpu.memory_space<vmem>>, %arg8: memref<1x128xf32, #tpu.memory_space<vmem>>, %arg9: memref<16x128xbf16, #tpu.memory_space<vmem>>) attributes {dimension_semantics = [#tpu.dimension_semantics<parallel>], iteration_bounds = array<i64: 1>, scalar_prefetch = 0 : i64, scratch_operands = 0 : i64, tpu.core_type = #tpu.core_type<tc>, window_params = [{transform_indices = @transform_0, window_bounds = array<i64: 1, 1>}, {transform_indices = @transform_1, window_bounds = array<i64: 16, 16>}, {pipeline_mode = #tpu.pipeline_mode<synchronous>, transform_indices = @transform_2, window_bounds = array<i64: 16, 512>}, {pipeline_mode = #tpu.pipeline_mode<synchronous>, transform_indices = @transform_3, window_bounds = array<i64: 1, 512>}, {pipeline_mode = #tpu.pipeline_mode<synchronous>, transform_indices = @transform_4, window_bounds = array<i64: 512, 384>}, {pipeline_mode = #tpu.pipeline_mode<synchronous>, transform_indices = @transform_5, window_bounds = array<i64: 1, 384>}, {pipeline_mode = #tpu.pipeline_mode<synchronous>, transform_indices = @transform_6, window_bounds = array<i64: 384, 128>}, {pipeline_mode = #tpu.pipeline_mode<synchronous>, transform_indices = @transform_7, window_bounds = array<i64: 1, 128>}, {transform_indices = @transform_8, window_bounds = array<i64: 16, 128>}]} {
    %c0 = arith.constant 0 : index
    %c0_0 = arith.constant 0 : index
    %0 = memref.load %arg1[%c0, %c0_0] : memref<1x1xf32, #tpu.memory_space<smem>>
    %c0_1 = arith.constant 0 : index
    %c0_2 = arith.constant 0 : index
    %1 = vector.load %arg2[%c0_1, %c0_2] : memref<16x16xf32, #tpu.memory_space<vmem>>, vector<16x16xf32>
    %2 = arith.truncf %1 : vector<16x16xf32> to vector<16x16xbf16>
    %c0_3 = arith.constant 0 : index
    %c0_4 = arith.constant 0 : index
    %3 = vector.load %arg3[%c0_3, %c0_4] : memref<16x512xbf16, #tpu.memory_space<vmem>>, vector<16x512xbf16>
    %cst = arith.constant dense<0.000000e+00> : vector<16x512xf32>
    %4 = tpu.matmul %2, %3, %cst {dimension_numbers = #tpu.dot_dimension_numbers<[1], [0], [0], [1], [0, 0, 1, 1], [], []>} : vector<16x16xbf16>, vector<16x512xbf16>, vector<16x512xf32> -> vector<16x512xf32>
    %c0_5 = arith.constant 0 : index
    %c0_6 = arith.constant 0 : index
    %5 = vector.load %arg4[%c0_5, %c0_6] : memref<1x512xf32, #tpu.memory_space<vmem>>, vector<1x512xf32>
    %6 = vector.broadcast %5 : vector<1x512xf32> to vector<16x512xf32>
    %7 = arith.addf %4, %6 : vector<16x512xf32>
    %cst_7 = arith.constant 0.000000e+00 : f32
    %8 = vector.broadcast %cst_7 : f32 to vector<16x512xf32>
    %9 = arith.maximumf %7, %8 : vector<16x512xf32>
    %10 = arith.truncf %9 : vector<16x512xf32> to vector<16x512xbf16>
    %c0_8 = arith.constant 0 : index
    %c0_9 = arith.constant 0 : index
    %11 = vector.load %arg5[%c0_8, %c0_9] : memref<512x384xbf16, #tpu.memory_space<vmem>>, vector<512x384xbf16>
    %cst_10 = arith.constant dense<0.000000e+00> : vector<16x384xf32>
    %12 = tpu.matmul %10, %11, %cst_10 {dimension_numbers = #tpu.dot_dimension_numbers<[1], [0], [0], [1], [0, 0, 1, 1], [], []>} : vector<16x512xbf16>, vector<512x384xbf16>, vector<16x384xf32> -> vector<16x384xf32>
    %c0_11 = arith.constant 0 : index
    %c0_12 = arith.constant 0 : index
    %13 = vector.load %arg6[%c0_11, %c0_12] : memref<1x384xf32, #tpu.memory_space<vmem>>, vector<1x384xf32>
    %14 = vector.broadcast %13 : vector<1x384xf32> to vector<16x384xf32>
    %15 = arith.addf %12, %14 : vector<16x384xf32>
    %cst_13 = arith.constant 0.000000e+00 : f32
    %16 = vector.broadcast %cst_13 : f32 to vector<16x384xf32>
    %17 = arith.maximumf %15, %16 : vector<16x384xf32>
    %18 = arith.truncf %17 : vector<16x384xf32> to vector<16x384xbf16>
    %c0_14 = arith.constant 0 : index
    %c0_15 = arith.constant 0 : index
    %19 = vector.load %arg7[%c0_14, %c0_15] : memref<384x128xbf16, #tpu.memory_space<vmem>>, vector<384x128xbf16>
    %cst_16 = arith.constant dense<0.000000e+00> : vector<16x128xf32>
    %20 = tpu.matmul %18, %19, %cst_16 {dimension_numbers = #tpu.dot_dimension_numbers<[1], [0], [0], [1], [0, 0, 1, 1], [], []>} : vector<16x384xbf16>, vector<384x128xbf16>, vector<16x128xf32> -> vector<16x128xf32>
    %c0_17 = arith.constant 0 : index
    %c0_18 = arith.constant 0 : index
    %21 = vector.load %arg8[%c0_17, %c0_18] : memref<1x128xf32, #tpu.memory_space<vmem>>, vector<1x128xf32>
    %22 = vector.broadcast %21 : vector<1x128xf32> to vector<16x128xf32>
    %23 = arith.addf %20, %22 : vector<16x128xf32>
    %24 = math.tanh %23 : vector<16x128xf32>
    %25 = vector.broadcast %0 : f32 to vector<16x128xf32>
    %26 = arith.mulf %25, %24 : vector<16x128xf32>
    %27 = arith.truncf %26 : vector<16x128xf32> to vector<16x128xbf16>
    %c0_19 = arith.constant 0 : index
    %c0_20 = arith.constant 0 : index
    %28 = vector.load %arg9[%c0_19, %c0_20] : memref<16x128xbf16, #tpu.memory_space<vmem>>, vector<16x128xbf16>
    tpu.vector_store %arg9[%c0_19, %c0_20], %27 {strides = array<i32>} : memref<16x128xbf16, #tpu.memory_space<vmem>>, vector<16x128xbf16>,
    return
  }
  func.func @transform_0(%arg0: i32) -> (i32, i32) {
    %c0_i32 = arith.constant 0 : i32
    %c0_i32_0 = arith.constant 0 : i32
    %c0_i32_1 = arith.constant 0 : i32
    return %c0_i32, %c0_i32_0 : i32, i32
  }
  func.func @transform_1(%arg0: i32) -> (i32, i32) {
    %c0_i32 = arith.constant 0 : i32
    %c0_i32_0 = arith.constant 0 : i32
    return %arg0, %c0_i32 : i32, i32
  }
  func.func @transform_2(%arg0: i32) -> (i32, i32) {
    %c0_i32 = arith.constant 0 : i32
    %c0_i32_0 = arith.constant 0 : i32
    %c0_i32_1 = arith.constant 0 : i32
    return %c0_i32, %c0_i32_0 : i32, i32
  }
  func.func @transform_3(%arg0: i32) -> (i32, i32) {
    %c0_i32 = arith.constant 0 : i32
    %c0_i32_0 = arith.constant 0 : i32
    %c0_i32_1 = arith.constant 0 : i32
    return %c0_i32, %c0_i32_0 : i32, i32
  }
  func.func @transform_4(%arg0: i32) -> (i32, i32) {
    %c0_i32 = arith.constant 0 : i32
    %c0_i32_0 = arith.constant 0 : i32
    %c0_i32_1 = arith.constant 0 : i32
    return %c0_i32, %c0_i32_0 : i32, i32
  }
  func.func @transform_5(%arg0: i32) -> (i32, i32) {
    %c0_i32 = arith.constant 0 : i32
    %c0_i32_0 = arith.constant 0 : i32
    %c0_i32_1 = arith.constant 0 : i32
    return %c0_i32, %c0_i32_0 : i32, i32
  }
  func.func @transform_6(%arg0: i32) -> (i32, i32) {
    %c0_i32 = arith.constant 0 : i32
    %c0_i32_0 = arith.constant 0 : i32
    %c0_i32_1 = arith.constant 0 : i32
    return %c0_i32, %c0_i32_0 : i32, i32
  }
  func.func @transform_7(%arg0: i32) -> (i32, i32) {
    %c0_i32 = arith.constant 0 : i32
    %c0_i32_0 = arith.constant 0 : i32
    %c0_i32_1 = arith.constant 0 : i32
    return %c0_i32, %c0_i32_0 : i32, i32
  }
  func.func @transform_8(%arg0: i32) -> (i32, i32) {
    %c0_i32 = arith.constant 0 : i32
    %c0_i32_0 = arith.constant 0 : i32
    return %arg0, %c0_i32 : i32, i32
  }
}

</mosaic_0001>

<llo_original>
// kernel: actor_forward.1
$region0: #{actor_forward.1}
  #allocation0 [shape = 'u32[]', space=smem, size = 0x4, offset = 0x4, fixed_abs, tag = 'smem constant byte address 0x4 - core index']
  #allocation1 [shape = 'u32[72,128]{1,0:T(1,128)}', space=vmem, size = 0x9000, scoped, tag = 'internal scratch']
  #allocation2 [shape = 'f32[1,1]{1,0:T(1,128)S(6)}', space=smem, size = 0x200, scoped, tag = 'scoped memory for actor_forward.1']
  %s0 = inlined_call_operand.<no memory space> [shape: f32[1,1], index: 0, kind: input, shape index: {}]
  %s1 = inlined_call_operand.vmem [shape: f32[16,16], index: 1, kind: input, shape index: {}]
  %s2 = inlined_call_operand.hbm [shape: bf16[16,512], index: 2, kind: input, shape index: {}]
  %s3 = inlined_call_operand.vmem [shape: f32[1,512], index: 3, kind: input, shape index: {}]
  %s4 = inlined_call_operand.hbm [shape: bf16[512,384], index: 4, kind: input, shape index: {}]
  %s5 = inlined_call_operand.vmem [shape: f32[1,384], index: 5, kind: input, shape index: {}]
  %s6 = inlined_call_operand.hbm [shape: bf16[384,128], index: 6, kind: input, shape index: {}]
  %s7 = inlined_call_operand.vmem [shape: f32[1,128], index: 7, kind: input, shape index: {}]
  %s8 = inlined_call_operand.vmem [shape: bf16[16,128], index: 8, kind: output, shape index: {}]
  %s9 = sld [smem:[#allocation0]]
  $region54: #{actor_forward.1} parent=0
    _
  %s11 = ssub.s32 1, %s9
  %s12 = scalar_select 0, %s11, %s9
  %13 = sst [smem:[#allocation2]] %s0
  $region1: #{actor_forward.1} parent=0
    #allocation3 [shape = 'u8[16384]{0}', space=vmem, size = 0x4000, scoped, tag = 'input window, operand 2, single buffered']
    #allocation4 [shape = 's32[1]{0}', space=sflag, size = 0x4, scoped, tag = 'scoped memory for actor_forward.1']
    #allocation5 [shape = 'u8[393216]{0}', space=vmem, size = 0x60000, scoped, tag = 'input window, operand 4, single buffered']
    #allocation6 [shape = 's32[1]{0}', space=sflag, size = 0x4, scoped, tag = 'scoped memory for actor_forward.1']
    #allocation7 [shape = 'u8[98304]{0}', space=vmem, size = 0x18000, scoped, tag = 'input window, operand 6, single buffered']
    %14 = vsyncpa [#allocation4], 0
    %15 = vsyncpa [#allocation6], 0
    // Predicated region
    $region2: #{actor_forward.1} parent=1 // pred_check
      _
    $region3: #{actor_forward.1} parent=1 // pred_check_branch
      %17 = sbr.rel (0) target = $region5
    $region4: #{actor_forward.1} parent=1 // pred_region
      _
    $region5: #{actor_forward.1} parent=1 // pred_fallthru
      _
    // Predicated region
    $region6: #{actor_forward.1} parent=1 // pred_check
      _
    $region7: #{actor_forward.1} parent=1 // pred_check_branch
      %19 = sbr.rel (0) target = $region9
    $region8: #{actor_forward.1} parent=1 // pred_region
      _
    $region9: #{actor_forward.1} parent=1 // pred_fallthru
      _
    // Predicated region
    $region10: #{actor_forward.1} parent=1 // pred_check
      _
    $region11: #{actor_forward.1} parent=1 // pred_check_branch
      %21 = sbr.rel (0) target = $region13
    $region12: #{actor_forward.1} parent=1 // pred_region
      %23 = vsyncadd [#allocation4], 0
      %s24 = sshll.u32 %s2, 4
      %s25 = int_to_ptr.hbm [resolvable:$true] %s24
      %s26 = sshll.u32 [#allocation3], 4
      %s27 = int_to_ptr.vmem [resolvable:$true] %s26
      %32 = dma.hbm_to_vmem [thread:$0]  %s25, 512, %s27, [#allocation4], 256, 256, 16
    $region13: #{actor_forward.1} parent=1 // pred_fallthru
      _
    // Predicated region
    $region14: #{actor_forward.1} parent=1 // pred_check
      _
    $region15: #{actor_forward.1} parent=1 // pred_check_branch
      %34 = sbr.rel (0) target = $region17
    $region16: #{actor_forward.1} parent=1 // pred_region
      _
    $region17: #{actor_forward.1} parent=1 // pred_fallthru
      _
    // Predicated region
    $region18: #{actor_forward.1} parent=1 // pred_check
      _
    $region19: #{actor_forward.1} parent=1 // pred_check_branch
      %36 = sbr.rel (0) target = $region21
    $region20: #{actor_forward.1} parent=1 // pred_region
      %38 = vsyncadd [#allocation6], 0
      %s39 = sshll.u32 %s4, 4
      %s40 = int_to_ptr.hbm [resolvable:$true] %s39
      %s41 = sshll.u32 [#allocation5], 4
      %s42 = int_to_ptr.vmem [resolvable:$true] %s41
      %47 = dma.hbm_to_vmem [thread:$0]  %s40, 12288, %s42, [#allocation6], 192, 192, 12
    $region21: #{actor_forward.1} parent=1 // pred_fallthru
      _
    // Predicated region
    $region22: #{actor_forward.1} parent=1 // pred_check
      _
    $region23: #{actor_forward.1} parent=1 // pred_check_branch
      %49 = sbr.rel (0) target = $region25
    $region24: #{actor_forward.1} parent=1 // pred_region
      _
    $region25: #{actor_forward.1} parent=1 // pred_fallthru
      _
    // Predicated region
    $region26: #{actor_forward.1} parent=1 // pred_check
      _
    $region27: #{actor_forward.1} parent=1 // pred_check_branch
      %51 = sbr.rel (0) target = $region29
    $region28: #{actor_forward.1} parent=1 // pred_region
      %53 = vsyncadd [#allocation6], 0
      %s54 = sshll.u32 %s6, 4
      %s55 = int_to_ptr.hbm [resolvable:$true] %s54
      %s56 = sshll.u32 [#allocation7], 4
      %s57 = int_to_ptr.vmem [resolvable:$true] %s56
      %62 = dma.hbm_to_vmem [thread:$0]  %s55, 3072, %s57, [#allocation6], 64, 64, 4
    $region29: #{actor_forward.1} parent=1 // pred_fallthru
      _
    // Predicated region
    $region30: #{actor_forward.1} parent=1 // pred_check
      _
    $region31: #{actor_forward.1} parent=1 // pred_check_branch
      %64 = sbr.rel (0) target = $region33
    $region32: #{actor_forward.1} parent=1 // pred_region
      _
    $region33: #{actor_forward.1} parent=1 // pred_fallthru
      _
    // Predicated region
    $region34: #{actor_forward.1} parent=1 // pred_check
      _
    $region35: #{actor_forward.1} parent=1 // pred_check_branch
      %66 = sbr.rel (0) target = $region37
    $region36: #{actor_forward.1} parent=1 // pred_region
      %68 = dma.done [#allocation4], 512
    $region37: #{actor_forward.1} parent=1 // pred_fallthru
      _
    // Predicated region
    $region38: #{actor_forward.1} parent=1 // pred_check
      _
    $region39: #{actor_forward.1} parent=1 // pred_check_branch
      %70 = sbr.rel (0) target = $region41
    $region40: #{actor_forward.1} parent=1 // pred_region
      %72 = dma.done [#allocation6], 12288
    $region41: #{actor_forward.1} parent=1 // pred_fallthru
      _
    // Predicated region
    $region42: #{actor_forward.1} parent=1 // pred_check
      _
    $region43: #{actor_forward.1} parent=1 // pred_check_branch
      %74 = sbr.rel (0) target = $region45
    $region44: #{actor_forward.1} parent=1 // pred_region
      %76 = dma.done [#allocation6], 3072
    $region45: #{actor_forward.1} parent=1 // pred_fallthru
      _
    %s78 = sld [smem:[#allocation2]]
    %v79 = vld [vmem:[%s1] sm:$0xff]
    %v80 = vld [vmem:[%s1 + $0x8] sm:$0xff]
    %v81 = vpack.c.bf16 %v80, %v79
    %v82 = vld [vmem:[#allocation3] sm:$0xff]
    %v83 = vld [vmem:[#allocation3 + $0x8] sm:$0xff]
    %v84 = vld [vmem:[#allocation3 + $0x10] sm:$0xff]
    %v85 = vld [vmem:[#allocation3 + $0x18] sm:$0xff]
    %v86 = vld [vmem:[%s3] sm:$0xf]
    %v88 = vperm.slane %v86, 0
    %v89 = vperm.slane %v86, 1
    %v90 = vperm.slane %v86, 2
    %v91 = vperm.slane %v86, 3
    %v100 = vunpack.c.l.b16 %v82
    %v101 = vunpack.c.h.b16 %v82
    %v102 = vunpack.c.l.b16 %v83
    %v103 = vunpack.c.h.b16 %v83
    %v104 = vunpack.c.l.b16 %v84
    %v105 = vunpack.c.h.b16 %v84
    %v106 = vunpack.c.l.b16 %v85
    %v107 = vunpack.c.h.b16 %v85
    %v108 = vpack.c.b16 %v104, %v100
    %v109 = vpack.c.b16 %v105, %v101
    %v110 = vpack.c.b16 %v106, %v102
    %v111 = vpack.c.b16 %v107, %v103
    %vm116 = vcmask 130048
    %v118 = vsel %vm116, %v81, 0
    %120 = vmatpush.bf16.msra.mxu0 0
    %121 = vmatpush.bf16.msra.mxu0 0
    %122 = vmatpush.bf16.msra.mxu0 0
    %123 = vmatpush.bf16.msra.mxu0 0
    %124 = vmatpush.bf16.msra.mxu0 0
    %125 = vmatpush.bf16.msra.mxu0 0
    %126 = vmatpush.bf16.msra.mxu0 0
    %127 = vmatpush.bf16.msra.mxu0 %v108
    %128 = vmatmul.bf16.gmra.mxu0 %v118
    %v129 = vpop.f32.mrf.mxu0
    %v130 = vadd.f32 %v88, %v129
    %v131 = vpop.f32.mrf.mxu0
    %v132 = vadd.f32 %v88, %v131
    %133 = vdwg.mxu0
    %134 = vmatpush.bf16.msra.mxu0 0
    %135 = vmatpush.bf16.msra.mxu0 0
    %136 = vmatpush.bf16.msra.mxu0 0
    %137 = vmatpush.bf16.msra.mxu0 0
    %138 = vmatpush.bf16.msra.mxu0 0
    %139 = vmatpush.bf16.msra.mxu0 0
    %140 = vmatpush.bf16.msra.mxu0 0
    %141 = vmatpush.bf16.msra.mxu0 %v109
    %142 = vmatmul.bf16.gmra.mxu0 %v118
    %v143 = vpop.f32.mrf.mxu0
    %v144 = vadd.f32 %v89, %v143
    %v145 = vpop.f32.mrf.mxu0
    %v146 = vadd.f32 %v89, %v145
    %147 = vdwg.mxu0
    %148 = vmatpush.bf16.msra.mxu0 0
    %149 = vmatpush.bf16.msra.mxu0 0
    %150 = vmatpush.bf16.msra.mxu0 0
    %151 = vmatpush.bf16.msra.mxu0 0
    %152 = vmatpush.bf16.msra.mxu0 0
    %153 = vmatpush.bf16.msra.mxu0 0
    %154 = vmatpush.bf16.msra.mxu0 0
    %155 = vmatpush.bf16.msra.mxu0 %v110
    %156 = vmatmul.bf16.gmra.mxu0 %v118
    %v157 = vpop.f32.mrf.mxu0
    %v158 = vadd.f32 %v90, %v157
    %v159 = vpop.f32.mrf.mxu0
    %v160 = vadd.f32 %v90, %v159
    %161 = vdwg.mxu0
    %162 = vmatpush.bf16.msra.mxu0 0
    %163 = vmatpush.bf16.msra.mxu0 0
    %164 = vmatpush.bf16.msra.mxu0 0
    %165 = vmatpush.bf16.msra.mxu0 0
    %166 = vmatpush.bf16.msra.mxu0 0
    %167 = vmatpush.bf16.msra.mxu0 0
    %168 = vmatpush.bf16.msra.mxu0 0
    %169 = vmatpush.bf16.msra.mxu0 %v111
    %170 = vmatmul.bf16.gmra.mxu0 %v118
    %v171 = vpop.f32.mrf.mxu0
    %v172 = vadd.f32 %v91, %v171
    %v173 = vpop.f32.mrf.mxu0
    %v174 = vadd.f32 %v91, %v173
    %175 = vdwg.mxu0
    %v176 = vmax.f32 %v130, 0.0
    %v177 = vmax.f32 %v144, 0.0
    %v178 = vmax.f32 %v158, 0.0
    %v179 = vmax.f32 %v172, 0.0
    %v180 = vmax.f32 %v132, 0.0
    %v181 = vmax.f32 %v146, 0.0
    %v182 = vmax.f32 %v160, 0.0
    %v183 = vmax.f32 %v174, 0.0
    %v184 = vpack.c.bf16 %v180, %v176
    %v185 = vpack.c.bf16 %v181, %v177
    %v186 = vpack.c.bf16 %v182, %v178
    %v187 = vpack.c.bf16 %v183, %v179
    %v188 = vld [vmem:[#allocation5] sm:$0xff]
    %v189 = vld [vmem:[#allocation5 + $0x8] sm:$0xf]
    %v190 = vld [vmem:[#allocation5 + $0xc] sm:$0xff]
    %v191 = vld [vmem:[#allocation5 + $0x14] sm:$0xf]
    %v192 = vld [vmem:[#allocation5 + $0x18] sm:$0xff]
    %v193 = vld [vmem:[#allocation5 + $0x20] sm:$0xf]
    %v194 = vld [vmem:[#allocation5 + $0x24] sm:$0xff]
    %v195 = vld [vmem:[#allocation5 + $0x2c] sm:$0xf]
    %v196 = vld [vmem:[#allocation5 + $0x30] sm:$0xff]
    %v197 = vld [vmem:[#allocation5 + $0x38] sm:$0xf]
    %v198 = vld [vmem:[#allocation5 + $0x3c] sm:$0xff]
    %v199 = vld [vmem:[#allocation5 + $0x44] sm:$0xf]
    %v200 = vld [vmem:[#allocation5 + $0x48] sm:$0xff]
    %v201 = vld [vmem:[#allocation5 + $0x50] sm:$0xf]
    %v202 = vld [vmem:[#allocation5 + $0x54] sm:$0xff]
    %v203 = vld [vmem:[#allocation5 + $0x5c] sm:$0xf]
    %v204 = vld [vmem:[#allocation5 + $0x60] sm:$0xff]
    %v205 = vld [vmem:[#allocation5 + $0x68] sm:$0xf]
    %v206 = vld [vmem:[#allocation5 + $0x6c] sm:$0xff]
    %v207 = vld [vmem:[#allocation5 + $0x74] sm:$0xf]
    %v208 = vld [vmem:[#allocation5 + $0x78] sm:$0xff]
    %v209 = vld [vmem:[#allocation5 + $0x80] sm:$0xf]
    %v210 = vld [vmem:[#allocation5 + $0x84] sm:$0xff]
    %v211 = vld [vmem:[#allocation5 + $0x8c] sm:$0xf]
    %v212 = vld [vmem:[#allocation5 + $0x90] sm:$0xff]
    %v213 = vld [vmem:[#allocation5 + $0x98] sm:$0xf]
    %v214 = vld [vmem:[#allocation5 + $0x9c] sm:$0xff]
    %v215 = vld [vmem:[#allocation5 + $0xa4] sm:$0xf]
    %v216 = vld [vmem:[#allocation5 + $0xa8] sm:$0xff]
    %v217 = vld [vmem:[#allocation5 + $0xb0] sm:$0xf]
    %v218 = vld [vmem:[#allocation5 + $0xb4] sm:$0xff]
    %v219 = vld [vmem:[#allocation5 + $0xbc] sm:$0xf]
    %v220 = vld [vmem:[#allocation5 + $0xc0] sm:$0xff]
    %v221 = vld [vmem:[#allocation5 + $0xc8] sm:$0xf]
    %v222 = vld [vmem:[#allocation5 + $0xcc] sm:$0xff]
    %v223 = vld [vmem:[#allocation5 + $0xd4] sm:$0xf]
    %v224 = vld [vmem:[#allocation5 + $0xd8] sm:$0xff]
    %v225 = vld [vmem:[#allocation5 + $0xe0] sm:$0xf]
    %v226 = vld [vmem:[#allocation5 + $0xe4] sm:$0xff]
    %v227 = vld [vmem:[#allocation5 + $0xec] sm:$0xf]
    %v228 = vld [vmem:[#allocation5 + $0xf0] sm:$0xff]
    %v229 = vld [vmem:[#allocation5 + $0xf8] sm:$0xf]
    %v230 = vld [vmem:[#allocation5 + $0xfc] sm:$0xff]
    %v231 = vld [vmem:[#allocation5 + $0x104] sm:$0xf]
    %v232 = vld [vmem:[#allocation5 + $0x108] sm:$0xff]
    %v233 = vld [vmem:[#allocation5 + $0x110] sm:$0xf]
    %v234 = vld [vmem:[#allocation5 + $0x114] sm:$0xff]
    %v235 = vld [vmem:[#allocation5 + $0x11c] sm:$0xf]
    %v236 = vld [vmem:[#allocation5 + $0x120] sm:$0xff]
    %v237 = vld [vmem:[#allocation5 + $0x128] sm:$0xf]
    %v238 = vld [vmem:[#allocation5 + $0x12c] sm:$0xff]
    %v239 = vld [vmem:[#allocation5 + $0x134] sm:$0xf]
    %v240 = vld [vmem:[#allocation5 + $0x138] sm:$0xff]
    %v241 = vld [vmem:[#allocation5 + $0x140] sm:$0xf]
    %v242 = vld [vmem:[#allocation5 + $0x144] sm:$0xff]
    %v243 = vld [vmem:[#allocation5 + $0x14c] sm:$0xf]
    %v244 = vld [vmem:[#allocation5 + $0x150] sm:$0xff]
    %v245 = vld [vmem:[#allocation5 + $0x158] sm:$0xf]
    %v246 = vld [vmem:[#allocation5 + $0x15c] sm:$0xff]
    %v247 = vld [vmem:[#allocation5 + $0x164] sm:$0xf]
    %v248 = vld [vmem:[#allocation5 + $0x168] sm:$0xff]
    %v249 = vld [vmem:[#allocation5 + $0x170] sm:$0xf]
    %v250 = vld [vmem:[#allocation5 + $0x174] sm:$0xff]
    %v251 = vld [vmem:[#allocation5 + $0x17c] sm:$0xf]
    %v252 = vld [vmem:[#allocation5 + $0x180] sm:$0xff]
    %v253 = vld [vmem:[#allocation5 + $0x188] sm:$0xf]
    %v254 = vld [vmem:[#allocation5 + $0x18c] sm:$0xff]
    %v255 = vld [vmem:[#allocation5 + $0x194] sm:$0xf]
    %v256 = vld [vmem:[#allocation5 + $0x198] sm:$0xff]
    %v257 = vld [vmem:[#allocation5 + $0x1a0] sm:$0xf]
    %v258 = vld [vmem:[#allocation5 + $0x1a4] sm:$0xff]
    %v259 = vld [vmem:[#allocation5 + $0x1ac] sm:$0xf]
    %v260 = vld [vmem:[#allocation5 + $0x1b0] sm:$0xff]
    %v261 = vld [vmem:[#allocation5 + $0x1b8] sm:$0xf]
    %v262 = vld [vmem:[#allocation5 + $0x1bc] sm:$0xff]
    %v263 = vld [vmem:[#allocation5 + $0x1c4] sm:$0xf]
    %v264 = vld [vmem:[#allocation5 + $0x1c8] sm:$0xff]
    %v265 = vld [vmem:[#allocation5 + $0x1d0] sm:$0xf]
    %v266 = vld [vmem:[#allocation5 + $0x1d4] sm:$0xff]
    %v267 = vld [vmem:[#allocation5 + $0x1dc] sm:$0xf]
    %v268 = vld [vmem:[#allocation5 + $0x1e0] sm:$0xff]
    %v269 = vld [vmem:[#allocation5 + $0x1e8] sm:$0xf]
    %v270 = vld [vmem:[#allocation5 + $0x1ec] sm:$0xff]
    %v271 = vld [vmem:[#allocation5 + $0x1f4] sm:$0xf]
    %v272 = vld [vmem:[#allocation5 + $0x1f8] sm:$0xff]
    %v273 = vld [vmem:[#allocation5 + $0x200] sm:$0xf]
    %v274 = vld [vmem:[#allocation5 + $0x204] sm:$0xff]
    %v275 = vld [vmem:[#allocation5 + $0x20c] sm:$0xf]
    %v276 = vld [vmem:[#allocation5 + $0x210] sm:$0xff]
    %v277 = vld [vmem:[#allocation5 + $0x218] sm:$0xf]
    %v278 = vld [vmem:[#allocation5 + $0x21c] sm:$0xff]
    %v279 = vld [vmem:[#allocation5 + $0x224] sm:$0xf]
    %v280 = vld [vmem:[#allocation5 + $0x228] sm:$0xff]
    %v281 = vld [vmem:[#allocation5 + $0x230] sm:$0xf]
    %v282 = vld [vmem:[#allocation5 + $0x234] sm:$0xff]
    %v283 = vld [vmem:[#allocation5 + $0x23c] sm:$0xf]
    %v284 = vld [vmem:[#allocation5 + $0x240] sm:$0xff]
    %v285 = vld [vmem:[#allocation5 + $0x248] sm:$0xf]
    %v286 = vld [vmem:[#allocation5 + $0x24c] sm:$0xff]
    %v287 = vld [vmem:[#allocation5 + $0x254] sm:$0xf]
    %v288 = vld [vmem:[#allocation5 + $0x258] sm:$0xff]
    %v289 = vld [vmem:[#allocation5 + $0x260] sm:$0xf]
    %v290 = vld [vmem:[#allocation5 + $0x264] sm:$0xff]
    %v291 = vld [vmem:[#allocation5 + $0x26c] sm:$0xf]
    %v292 = vld [vmem:[#allocation5 + $0x270] sm:$0xff]
    %v293 = vld [vmem:[#allocation5 + $0x278] sm:$0xf]
    %v294 = vld [vmem:[#allocation5 + $0x27c] sm:$0xff]
    %v295 = vld [vmem:[#allocation5 + $0x284] sm:$0xf]
    %v296 = vld [vmem:[#allocation5 + $0x288] sm:$0xff]
    %v297 = vld [vmem:[#allocation5 + $0x290] sm:$0xf]
    %v298 = vld [vmem:[#allocation5 + $0x294] sm:$0xff]
    %v299 = vld [vmem:[#allocation5 + $0x29c] sm:$0xf]
    %v300 = vld [vmem:[#allocation5 + $0x2a0] sm:$0xff]
    %v301 = vld [vmem:[#allocation5 + $0x2a8] sm:$0xf]
    %v302 = vld [vmem:[#allocation5 + $0x2ac] sm:$0xff]
    %v303 = vld [vmem:[#allocation5 + $0x2b4] sm:$0xf]
    %v304 = vld [vmem:[#allocation5 + $0x2b8] sm:$0xff]
    %v305 = vld [vmem:[#allocation5 + $0x2c0] sm:$0xf]
    %v306 = vld [vmem:[#allocation5 + $0x2c4] sm:$0xff]
    %v307 = vld [vmem:[#allocation5 + $0x2cc] sm:$0xf]
    %v308 = vld [vmem:[#allocation5 + $0x2d0] sm:$0xff]
    %v309 = vld [vmem:[#allocation5 + $0x2d8] sm:$0xf]
    %v310 = vld [vmem:[#allocation5 + $0x2dc] sm:$0xff]
    %v311 = vld [vmem:[#allocation5 + $0x2e4] sm:$0xf]
    %v312 = vld [vmem:[#allocation5 + $0x2e8] sm:$0xff]
    %v313 = vld [vmem:[#allocation5 + $0x2f0] sm:$0xf]
    %v314 = vld [vmem:[#allocation5 + $0x2f4] sm:$0xff]
    %v315 = vld [vmem:[#allocation5 + $0x2fc] sm:$0xf]
    %v316 = vld [vmem:[%s5] sm:$0x7]
    %v318 = vperm.slane %v316, 0
    %v319 = vperm.slane %v316, 1
    %v320 = vperm.slane %v316, 2
    %v452 = vunpack.c.l.b16 %v188
    %v453 = vunpack.c.h.b16 %v188
    %v454 = vunpack.c.l.b16 %v189
    %v455 = vunpack.c.l.b16 %v190
    %v456 = vunpack.c.h.b16 %v190
    %v457 = vunpack.c.l.b16 %v191
    %v458 = vunpack.c.l.b16 %v192
    %v459 = vunpack.c.h.b16 %v192
    %v460 = vunpack.c.l.b16 %v193
    %v461 = vunpack.c.l.b16 %v194
    %v462 = vunpack.c.h.b16 %v194
    %v463 = vunpack.c.l.b16 %v195
    %v464 = vunpack.c.l.b16 %v196
    %v465 = vunpack.c.h.b16 %v196
    %v466 = vunpack.c.l.b16 %v197
    %v467 = vunpack.c.l.b16 %v198
    %v468 = vunpack.c.h.b16 %v198
    %v469 = vunpack.c.l.b16 %v199
    %v470 = vunpack.c.l.b16 %v200
    %v471 = vunpack.c.h.b16 %v200
    %v472 = vunpack.c.l.b16 %v201
    %v473 = vunpack.c.l.b16 %v202
    %v474 = vunpack.c.h.b16 %v202
    %v475 = vunpack.c.l.b16 %v203
    %v476 = vunpack.c.l.b16 %v204
    %v477 = vunpack.c.h.b16 %v204
    %v478 = vunpack.c.l.b16 %v205
    %v479 = vunpack.c.l.b16 %v206
    %v480 = vunpack.c.h.b16 %v206
    %v481 = vunpack.c.l.b16 %v207
    %v482 = vunpack.c.l.b16 %v208
    %v483 = vunpack.c.h.b16 %v208
    %v484 = vunpack.c.l.b16 %v209
    %v485 = vunpack.c.l.b16 %v210
    %v486 = vunpack.c.h.b16 %v210
    %v487 = vunpack.c.l.b16 %v211
    %v488 = vunpack.c.l.b16 %v212
    %v489 = vunpack.c.h.b16 %v212
    %v490 = vunpack.c.l.b16 %v213
    %v491 = vunpack.c.l.b16 %v214
    %v492 = vunpack.c.h.b16 %v214
    %v493 = vunpack.c.l.b16 %v215
    %v494 = vunpack.c.l.b16 %v216
    %v495 = vunpack.c.h.b16 %v216
    %v496 = vunpack.c.l.b16 %v217
    %v497 = vunpack.c.l.b16 %v218
    %v498 = vunpack.c.h.b16 %v218
    %v499 = vunpack.c.l.b16 %v219
    %v500 = vunpack.c.l.b16 %v220
    %v501 = vunpack.c.h.b16 %v220
    %v502 = vunpack.c.l.b16 %v221
    %v503 = vunpack.c.l.b16 %v222
    %v504 = vunpack.c.h.b16 %v222
    %v505 = vunpack.c.l.b16 %v223
    %v506 = vunpack.c.l.b16 %v224
    %v507 = vunpack.c.h.b16 %v224
    %v508 = vunpack.c.l.b16 %v225
    %v509 = vunpack.c.l.b16 %v226
    %v510 = vunpack.c.h.b16 %v226
    %v511 = vunpack.c.l.b16 %v227
    %v512 = vunpack.c.l.b16 %v228
    %v513 = vunpack.c.h.b16 %v228
    %v514 = vunpack.c.l.b16 %v229
    %v515 = vunpack.c.l.b16 %v230
    %v516 = vunpack.c.h.b16 %v230
    %v517 = vunpack.c.l.b16 %v231
    %v518 = vunpack.c.l.b16 %v232
    %v519 = vunpack.c.h.b16 %v232
    %v520 = vunpack.c.l.b16 %v233
    %v521 = vunpack.c.l.b16 %v234
    %v522 = vunpack.c.h.b16 %v234
    %v523 = vunpack.c.l.b16 %v235
    %v524 = vunpack.c.l.b16 %v236
    %v525 = vunpack.c.h.b16 %v236
    %v526 = vunpack.c.l.b16 %v237
    %v527 = vunpack.c.l.b16 %v238
    %v528 = vunpack.c.h.b16 %v238
    %v529 = vunpack.c.l.b16 %v239
    %v530 = vunpack.c.l.b16 %v240
    %v531 = vunpack.c.h.b16 %v240
    %v532 = vunpack.c.l.b16 %v241
    %v533 = vunpack.c.l.b16 %v242
    %v534 = vunpack.c.h.b16 %v242
    %v535 = vunpack.c.l.b16 %v243
    %v536 = vunpack.c.l.b16 %v244
    %v537 = vunpack.c.h.b16 %v244
    %v538 = vunpack.c.l.b16 %v245
    %v539 = vunpack.c.l.b16 %v246
    %v540 = vunpack.c.h.b16 %v246
    %v541 = vunpack.c.l.b16 %v247
    %v542 = vunpack.c.l.b16 %v248
    %v543 = vunpack.c.h.b16 %v248
    %v544 = vunpack.c.l.b16 %v249
    %v545 = vunpack.c.l.b16 %v250
    %v546 = vunpack.c.h.b16 %v250
    %v547 = vunpack.c.l.b16 %v251
    %v548 = vunpack.c.l.b16 %v252
    %v549 = vunpack.c.h.b16 %v252
    %v550 = vunpack.c.l.b16 %v253
    %v551 = vunpack.c.l.b16 %v254
    %v552 = vunpack.c.h.b16 %v254
    %v553 = vunpack.c.l.b16 %v255
    %v554 = vunpack.c.l.b16 %v256
    %v555 = vunpack.c.h.b16 %v256
    %v556 = vunpack.c.l.b16 %v257
    %v557 = vunpack.c.l.b16 %v258
    %v558 = vunpack.c.h.b16 %v258
    %v559 = vunpack.c.l.b16 %v259
    %v560 = vunpack.c.l.b16 %v260
    %v561 = vunpack.c.h.b16 %v260
    %v562 = vunpack.c.l.b16 %v261
    %v563 = vunpack.c.l.b16 %v262
    %v564 = vunpack.c.h.b16 %v262
    %v565 = vunpack.c.l.b16 %v263
    %v566 = vunpack.c.l.b16 %v264
    %v567 = vunpack.c.h.b16 %v264
    %v568 = vunpack.c.l.b16 %v265
    %v569 = vunpack.c.l.b16 %v266
    %v570 = vunpack.c.h.b16 %v266
    %v571 = vunpack.c.l.b16 %v267
    %v572 = vunpack.c.l.b16 %v268
    %v573 = vunpack.c.h.b16 %v268
    %v574 = vunpack.c.l.b16 %v269
    %v575 = vunpack.c.l.b16 %v270
    %v576 = vunpack.c.h.b16 %v270
    %v577 = vunpack.c.l.b16 %v271
    %v578 = vunpack.c.l.b16 %v272
    %v579 = vunpack.c.h.b16 %v272
    %v580 = vunpack.c.l.b16 %v273
    %v581 = vunpack.c.l.b16 %v274
    %v582 = vunpack.c.h.b16 %v274
    %v583 = vunpack.c.l.b16 %v275
    %v584 = vunpack.c.l.b16 %v276
    %v585 = vunpack.c.h.b16 %v276
    %v586 = vunpack.c.l.b16 %v277
    %v587 = vunpack.c.l.b16 %v278
    %v588 = vunpack.c.h.b16 %v278
    %v589 = vunpack.c.l.b16 %v279
    %v590 = vunpack.c.l.b16 %v280
    %v591 = vunpack.c.h.b16 %v280
    %v592 = vunpack.c.l.b16 %v281
    %v593 = vunpack.c.l.b16 %v282
    %v594 = vunpack.c.h.b16 %v282
    %v595 = vunpack.c.l.b16 %v283
    %v596 = vunpack.c.l.b16 %v284
    %v597 = vunpack.c.h.b16 %v284
    %v598 = vunpack.c.l.b16 %v285
    %v599 = vunpack.c.l.b16 %v286
    %v600 = vunpack.c.h.b16 %v286
    %v601 = vunpack.c.l.b16 %v287
    %v602 = vunpack.c.l.b16 %v288
    %v603 = vunpack.c.h.b16 %v288
    %v604 = vunpack.c.l.b16 %v289
    %v605 = vunpack.c.l.b16 %v290
    %v606 = vunpack.c.h.b16 %v290
    %v607 = vunpack.c.l.b16 %v291
    %v608 = vunpack.c.l.b16 %v292
    %v609 = vunpack.c.h.b16 %v292
    %v610 = vunpack.c.l.b16 %v293
    %v611 = vunpack.c.l.b16 %v294
    %v612 = vunpack.c.h.b16 %v294
    %v613 = vunpack.c.l.b16 %v295
    %v614 = vunpack.c.l.b16 %v296
    %v615 = vunpack.c.h.b16 %v296
    %v616 = vunpack.c.l.b16 %v297
    %v617 = vunpack.c.l.b16 %v298
    %v618 = vunpack.c.h.b16 %v298
    %v619 = vunpack.c.l.b16 %v299
    %v620 = vunpack.c.l.b16 %v300
    %v621 = vunpack.c.h.b16 %v300
    %v622 = vunpack.c.l.b16 %v301
    %v623 = vunpack.c.l.b16 %v302
    %v624 = vunpack.c.h.b16 %v302
    %v625 = vunpack.c.l.b16 %v303
    %v626 = vunpack.c.l.b16 %v304
    %v627 = vunpack.c.h.b16 %v304
    %v628 = vunpack.c.l.b16 %v305
    %v629 = vunpack.c.l.b16 %v306
    %v630 = vunpack.c.h.b16 %v306
    %v631 = vunpack.c.l.b16 %v307
    %v632 = vunpack.c.l.b16 %v308
    %v633 = vunpack.c.h.b16 %v308
    %v634 = vunpack.c.l.b16 %v309
    %v635 = vunpack.c.l.b16 %v310
    %v636 = vunpack.c.h.b16 %v310
    %v637 = vunpack.c.l.b16 %v311
    %v638 = vunpack.c.l.b16 %v312
    %v639 = vunpack.c.h.b16 %v312
    %v640 = vunpack.c.l.b16 %v313
    %v641 = vunpack.c.l.b16 %v314
    %v642 = vunpack.c.h.b16 %v314
    %v643 = vunpack.c.l.b16 %v315
    %v644 = vpack.c.b16 %v455, %v452
    %v645 = vpack.c.b16 %v456, %v453
    %v646 = vpack.c.b16 %v457, %v454
    %v647 = vpack.c.b16 %v461, %v458
    %v648 = vpack.c.b16 %v462, %v459
    %v649 = vpack.c.b16 %v463, %v460
    %v650 = vpack.c.b16 %v467, %v464
    %v651 = vpack.c.b16 %v468, %v465
    %v652 = vpack.c.b16 %v469, %v466
    %v653 = vpack.c.b16 %v473, %v470
    %v654 = vpack.c.b16 %v474, %v471
    %v655 = vpack.c.b16 %v475, %v472
    %v656 = vpack.c.b16 %v479, %v476
    %v657 = vpack.c.b16 %v480, %v477
    %v658 = vpack.c.b16 %v481, %v478
    %v659 = vpack.c.b16 %v485, %v482
    %v660 = vpack.c.b16 %v486, %v483
    %v661 = vpack.c.b16 %v487, %v484
    %v662 = vpack.c.b16 %v491, %v488
    %v663 = vpack.c.b16 %v492, %v489
    %v664 = vpack.c.b16 %v493, %v490
    %v665 = vpack.c.b16 %v497, %v494
    %v666 = vpack.c.b16 %v498, %v495
    %v667 = vpack.c.b16 %v499, %v496
    %v668 = vpack.c.b16 %v503, %v500
    %v669 = vpack.c.b16 %v504, %v501
    %v670 = vpack.c.b16 %v505, %v502
    %v671 = vpack.c.b16 %v509, %v506
    %v672 = vpack.c.b16 %v510, %v507
    %v673 = vpack.c.b16 %v511, %v508
    %v674 = vpack.c.b16 %v515, %v512
    %v675 = vpack.c.b16 %v516, %v513
    %v676 = vpack.c.b16 %v517, %v514
    %v677 = vpack.c.b16 %v521, %v518
    %v678 = vpack.c.b16 %v522, %v519
    %v679 = vpack.c.b16 %v523, %v520
    %v680 = vpack.c.b16 %v527, %v524
    %v681 = vpack.c.b16 %v528, %v525
    %v682 = vpack.c.b16 %v529, %v526
    %v683 = vpack.c.b16 %v533, %v530
    %v684 = vpack.c.b16 %v534, %v531
    %v685 = vpack.c.b16 %v535, %v532
    %v686 = vpack.c.b16 %v539, %v536
    %v687 = vpack.c.b16 %v540, %v537
    %v688 = vpack.c.b16 %v541, %v538
    %v689 = vpack.c.b16 %v545, %v542
    %v690 = vpack.c.b16 %v546, %v543
    %v691 = vpack.c.b16 %v547, %v544
    %v692 = vpack.c.b16 %v551, %v548
    %v693 = vpack.c.b16 %v552, %v549
    %v694 = vpack.c.b16 %v553, %v550
    %v695 = vpack.c.b16 %v557, %v554
    %v696 = vpack.c.b16 %v558, %v555
    %v697 = vpack.c.b16 %v559, %v556
    %v698 = vpack.c.b16 %v563, %v560
    %v699 = vpack.c.b16 %v564, %v561
    %v700 = vpack.c.b16 %v565, %v562
    %v701 = vpack.c.b16 %v569, %v566
    %v702 = vpack.c.b16 %v570, %v567
    %v703 = vpack.c.b16 %v571, %v568
    %v704 = vpack.c.b16 %v575, %v572
    %v705 = vpack.c.b16 %v576, %v573
    %v706 = vpack.c.b16 %v577, %v574
    %v707 = vpack.c.b16 %v581, %v578
    %v708 = vpack.c.b16 %v582, %v579
    %v709 = vpack.c.b16 %v583, %v580
    %v710 = vpack.c.b16 %v587, %v584
    %v711 = vpack.c.b16 %v588, %v585
    %v712 = vpack.c.b16 %v589, %v586
    %v713 = vpack.c.b16 %v593, %v590
    %v714 = vpack.c.b16 %v594, %v591
    %v715 = vpack.c.b16 %v595, %v592
    %v716 = vpack.c.b16 %v599, %v596
    %v717 = vpack.c.b16 %v600, %v597
    %v718 = vpack.c.b16 %v601, %v598
    %v719 = vpack.c.b16 %v605, %v602
    %v720 = vpack.c.b16 %v606, %v603
    %v721 = vpack.c.b16 %v607, %v604
    %v722 = vpack.c.b16 %v611, %v608
    %v723 = vpack.c.b16 %v612, %v609
    %v724 = vpack.c.b16 %v613, %v610
    %v725 = vpack.c.b16 %v617, %v614
    %v726 = vpack.c.b16 %v618, %v615
    %v727 = vpack.c.b16 %v619, %v616
    %v728 = vpack.c.b16 %v623, %v620
    %v729 = vpack.c.b16 %v624, %v621
    %v730 = vpack.c.b16 %v625, %v622
    %v731 = vpack.c.b16 %v629, %v626
    %v732 = vpack.c.b16 %v630, %v627
    %v733 = vpack.c.b16 %v631, %v628
    %v734 = vpack.c.b16 %v635, %v632
    %v735 = vpack.c.b16 %v636, %v633
    %v736 = vpack.c.b16 %v637, %v634
    %v737 = vpack.c.b16 %v641, %v638
    %v738 = vpack.c.b16 %v642, %v639
    %v739 = vpack.c.b16 %v643, %v640
    %836 = vmatpush.bf16.msra.mxu0 %v665
    %837 = vmatpush.bf16.msra.mxu0 %v662
    %838 = vmatpush.bf16.msra.mxu0 %v659
    %839 = vmatpush.bf16.msra.mxu0 %v656
    %840 = vmatpush.bf16.msra.mxu0 %v653
    %841 = vmatpush.bf16.msra.mxu0 %v650
    %842 = vmatpush.bf16.msra.mxu0 %v647
    %843 = vmatpush.bf16.msra.mxu0 %v644
    %844 = vmatmul.bf16.gmra.mxu0 %v184
    %v845 = vpop.f32.mrf.mxu0
    %v846 = vadd.f32 %v318, %v845
    %v847 = vpop.f32.mrf.mxu0
    %v848 = vadd.f32 %v318, %v847
    %849 = vdwg.mxu0
    %850 = vmatpush.bf16.msra.mxu0 %v689
    %851 = vmatpush.bf16.msra.mxu0 %v686
    %852 = vmatpush.bf16.msra.mxu0 %v683
    %853 = vmatpush.bf16.msra.mxu0 %v680
    %854 = vmatpush.bf16.msra.mxu0 %v677
    %855 = vmatpush.bf16.msra.mxu0 %v674
    %856 = vmatpush.bf16.msra.mxu0 %v671
    %857 = vmatpush.bf16.msra.mxu0 %v668
    %858 = vmatmul.bf16.gmra.mxu0 %v185
    %v859 = vpop.f32.mrf.mxu0
    %v860 = vadd.f32 %v846, %v859
    %v861 = vpop.f32.mrf.mxu0
    %v862 = vadd.f32 %v848, %v861
    %863 = vdwg.mxu0
    %864 = vmatpush.bf16.msra.mxu0 %v713
    %865 = vmatpush.bf16.msra.mxu0 %v710
    %866 = vmatpush.bf16.msra.mxu0 %v707
    %867 = vmatpush.bf16.msra.mxu0 %v704
    %868 = vmatpush.bf16.msra.mxu0 %v701
    %869 = vmatpush.bf16.msra.mxu0 %v698
    %870 = vmatpush.bf16.msra.mxu0 %v695
    %871 = vmatpush.bf16.msra.mxu0 %v692
    %872 = vmatmul.bf16.gmra.mxu0 %v186
    %v873 = vpop.f32.mrf.mxu0
    %v874 = vadd.f32 %v860, %v873
    %v875 = vpop.f32.mrf.mxu0
    %v876 = vadd.f32 %v862, %v875
    %877 = vdwg.mxu0
    %878 = vmatpush.bf16.msra.mxu0 %v737
    %879 = vmatpush.bf16.msra.mxu0 %v734
    %880 = vmatpush.bf16.msra.mxu0 %v731
    %881 = vmatpush.bf16.msra.mxu0 %v728
    %882 = vmatpush.bf16.msra.mxu0 %v725
    %883 = vmatpush.bf16.msra.mxu0 %v722
    %884 = vmatpush.bf16.msra.mxu0 %v719
    %885 = vmatpush.bf16.msra.mxu0 %v716
    %886 = vmatmul.bf16.gmra.mxu0 %v187
    %v887 = vpop.f32.mrf.mxu0
    %v888 = vadd.f32 %v874, %v887
    %v889 = vpop.f32.mrf.mxu0
    %v890 = vadd.f32 %v876, %v889
    %891 = vdwg.mxu0
    %892 = vmatpush.bf16.msra.mxu0 %v666
    %893 = vmatpush.bf16.msra.mxu0 %v663
    %894 = vmatpush.bf16.msra.mxu0 %v660
    %895 = vmatpush.bf16.msra.mxu0 %v657
    %896 = vmatpush.bf16.msra.mxu0 %v654
    %897 = vmatpush.bf16.msra.mxu0 %v651
    %898 = vmatpush.bf16.msra.mxu0 %v648
    %899 = vmatpush.bf16.msra.mxu0 %v645
    %900 = vmatmul.bf16.gmra.mxu0 %v184
    %v901 = vpop.f32.mrf.mxu0
    %v902 = vadd.f32 %v319, %v901
    %v903 = vpop.f32.mrf.mxu0
    %v904 = vadd.f32 %v319, %v903
    %905 = vdwg.mxu0
    %906 = vmatpush.bf16.msra.mxu0 %v690
    %907 = vmatpush.bf16.msra.mxu0 %v687
    %908 = vmatpush.bf16.msra.mxu0 %v684
    %909 = vmatpush.bf16.msra.mxu0 %v681
    %910 = vmatpush.bf16.msra.mxu0 %v678
    %911 = vmatpush.bf16.msra.mxu0 %v675
    %912 = vmatpush.bf16.msra.mxu0 %v672
    %913 = vmatpush.bf16.msra.mxu0 %v669
    %914 = vmatmul.bf16.gmra.mxu0 %v185
    %v915 = vpop.f32.mrf.mxu0
    %v916 = vadd.f32 %v902, %v915
    %v917 = vpop.f32.mrf.mxu0
    %v918 = vadd.f32 %v904, %v917
    %919 = vdwg.mxu0
    %920 = vmatpush.bf16.msra.mxu0 %v714
    %921 = vmatpush.bf16.msra.mxu0 %v711
    %922 = vmatpush.bf16.msra.mxu0 %v708
    %923 = vmatpush.bf16.msra.mxu0 %v705
    %924 = vmatpush.bf16.msra.mxu0 %v702
    %925 = vmatpush.bf16.msra.mxu0 %v699
    %926 = vmatpush.bf16.msra.mxu0 %v696
    %927 = vmatpush.bf16.msra.mxu0 %v693
    %928 = vmatmul.bf16.gmra.mxu0 %v186
    %v929 = vpop.f32.mrf.mxu0
    %v930 = vadd.f32 %v916, %v929
    %v931 = vpop.f32.mrf.mxu0
    %v932 = vadd.f32 %v918, %v931
    %933 = vdwg.mxu0
    %934 = vmatpush.bf16.msra.mxu0 %v738
    %935 = vmatpush.bf16.msra.mxu0 %v735
    %936 = vmatpush.bf16.msra.mxu0 %v732
    %937 = vmatpush.bf16.msra.mxu0 %v729
    %938 = vmatpush.bf16.msra.mxu0 %v726
    %939 = vmatpush.bf16.msra.mxu0 %v723
    %940 = vmatpush.bf16.msra.mxu0 %v720
    %941 = vmatpush.bf16.msra.mxu0 %v717
    %942 = vmatmul.bf16.gmra.mxu0 %v187
    %v943 = vpop.f32.mrf.mxu0
    %v944 = vadd.f32 %v930, %v943
    %v945 = vpop.f32.mrf.mxu0
    %v946 = vadd.f32 %v932, %v945
    %947 = vdwg.mxu0
    %948 = vmatpush.bf16.msra.mxu0 %v667
    %949 = vmatpush.bf16.msra.mxu0 %v664
    %950 = vmatpush.bf16.msra.mxu0 %v661
    %951 = vmatpush.bf16.msra.mxu0 %v658
    %952 = vmatpush.bf16.msra.mxu0 %v655
    %953 = vmatpush.bf16.msra.mxu0 %v652
    %954 = vmatpush.bf16.msra.mxu0 %v649
    %955 = vmatpush.bf16.msra.mxu0 %v646
    %956 = vmatmul.bf16.gmra.mxu0 %v184
    %v957 = vpop.f32.mrf.mxu0
    %v958 = vadd.f32 %v320, %v957
    %v959 = vpop.f32.mrf.mxu0
    %v960 = vadd.f32 %v320, %v959
    %961 = vdwg.mxu0
    %962 = vmatpush.bf16.msra.mxu0 %v691
    %963 = vmatpush.bf16.msra.mxu0 %v688
    %964 = vmatpush.bf16.msra.mxu0 %v685
    %965 = vmatpush.bf16.msra.mxu0 %v682
    %966 = vmatpush.bf16.msra.mxu0 %v679
    %967 = vmatpush.bf16.msra.mxu0 %v676
    %968 = vmatpush.bf16.msra.mxu0 %v673
    %969 = vmatpush.bf16.msra.mxu0 %v670
    %970 = vmatmul.bf16.gmra.mxu0 %v185
    %v971 = vpop.f32.mrf.mxu0
    %v972 = vadd.f32 %v958, %v971
    %v973 = vpop.f32.mrf.mxu0
    %v974 = vadd.f32 %v960, %v973
    %975 = vdwg.mxu0
    %976 = vmatpush.bf16.msra.mxu0 %v715
    %977 = vmatpush.bf16.msra.mxu0 %v712
    %978 = vmatpush.bf16.msra.mxu0 %v709
    %979 = vmatpush.bf16.msra.mxu0 %v706
    %980 = vmatpush.bf16.msra.mxu0 %v703
    %981 = vmatpush.bf16.msra.mxu0 %v700
    %982 = vmatpush.bf16.msra.mxu0 %v697
    %983 = vmatpush.bf16.msra.mxu0 %v694
    %984 = vmatmul.bf16.gmra.mxu0 %v186
    %v985 = vpop.f32.mrf.mxu0
    %v986 = vadd.f32 %v972, %v985
    %v987 = vpop.f32.mrf.mxu0
    %v988 = vadd.f32 %v974, %v987
    %989 = vdwg.mxu0
    %990 = vmatpush.bf16.msra.mxu0 %v739
    %991 = vmatpush.bf16.msra.mxu0 %v736
    %992 = vmatpush.bf16.msra.mxu0 %v733
    %993 = vmatpush.bf16.msra.mxu0 %v730
    %994 = vmatpush.bf16.msra.mxu0 %v727
    %995 = vmatpush.bf16.msra.mxu0 %v724
    %996 = vmatpush.bf16.msra.mxu0 %v721
    %997 = vmatpush.bf16.msra.mxu0 %v718
    %998 = vmatmul.bf16.gmra.mxu0 %v187
    %v999 = vpop.f32.mrf.mxu0
    %v1000 = vadd.f32 %v986, %v999
    %v1001 = vpop.f32.mrf.mxu0
    %v1002 = vadd.f32 %v988, %v1001
    %1003 = vdwg.mxu0
    %v1004 = vmax.f32 %v888, 0.0
    %v1005 = vmax.f32 %v944, 0.0
    %v1006 = vmax.f32 %v1000, 0.0
    %v1007 = vmax.f32 %v890, 0.0
    %v1008 = vmax.f32 %v946, 0.0
    %v1009 = vmax.f32 %v1002, 0.0
    %v1010 = vpack.c.bf16 %v1007, %v1004
    %v1011 = vpack.c.bf16 %v1008, %v1005
    %v1012 = vpack.c.bf16 %v1009, %v1006
    %v1013 = vld [vmem:[#allocation7] sm:$0xf]
    %v1014 = vld [vmem:[#allocation7 + $0x4] sm:$0xf]
    %v1015 = vld [vmem:[#allocation7 + $0x8] sm:$0xf]
    %v1016 = vld [vmem:[#allocation7 + $0xc] sm:$0xf]
    %v1017 = vld [vmem:[#allocation7 + $0x10] sm:$0xf]
    %v1018 = vld [vmem:[#allocation7 + $0x14] sm:$0xf]
    %v1019 = vld [vmem:[#allocation7 + $0x18] sm:$0xf]
    %v1020 = vld [vmem:[#allocation7 + $0x1c] sm:$0xf]
    %v1021 = vld [vmem:[#allocation7 + $0x20] sm:$0xf]
    %v1022 = vld [vmem:[#allocation7 + $0x24] sm:$0xf]
    %v1023 = vld [vmem:[#allocation7 + $0x28] sm:$0xf]
    %v1024 = vld [vmem:[#allocation7 + $0x2c] sm:$0xf]
    %v1025 = vld [vmem:[#allocation7 + $0x30] sm:$0xf]
    %v1026 = vld [vmem:[#allocation7 + $0x34] sm:$0xf]
    %v1027 = vld [vmem:[#allocation7 + $0x38] sm:$0xf]
    %v1028 = vld [vmem:[#allocation7 + $0x3c] sm:$0xf]
    %v1029 = vld [vmem:[#allocation7 + $0x40] sm:$0xf]
    %v1030 = vld [vmem:[#allocation7 + $0x44] sm:$0xf]
    %v1031 = vld [vmem:[#allocation7 + $0x48] sm:$0xf]
    %v1032 = vld [vmem:[#allocation7 + $0x4c] sm:$0xf]
    %v1033 = vld [vmem:[#allocation7 + $0x50] sm:$0xf]
    %v1034 = vld [vmem:[#allocation7 + $0x54] sm:$0xf]
    %v1035 = vld [vmem:[#allocation7 + $0x58] sm:$0xf]
    %v1036 = vld [vmem:[#allocation7 + $0x5c] sm:$0xf]
    %v1037 = vld [vmem:[#allocation7 + $0x60] sm:$0xf]
    %v1038 = vld [vmem:[#allocation7 + $0x64] sm:$0xf]
    %v1039 = vld [vmem:[#allocation7 + $0x68] sm:$0xf]
    %v1040 = vld [vmem:[#allocation7 + $0x6c] sm:$0xf]
    %v1041 = vld [vmem:[#allocation7 + $0x70] sm:$0xf]
    %v1042 = vld [vmem:[#allocation7 + $0x74] sm:$0xf]
    %v1043 = vld [vmem:[#allocation7 + $0x78] sm:$0xf]
    %v1044 = vld [vmem:[#allocation7 + $0x7c] sm:$0xf]
    %v1045 = vld [vmem:[#allocation7 + $0x80] sm:$0xf]
    %v1046 = vld [vmem:[#allocation7 + $0x84] sm:$0xf]
    %v1047 = vld [vmem:[#allocation7 + $0x88] sm:$0xf]
    %v1048 = vld [vmem:[#allocation7 + $0x8c] sm:$0xf]
    %v1049 = vld [vmem:[#allocation7 + $0x90] sm:$0xf]
    %v1050 = vld [vmem:[#allocation7 + $0x94] sm:$0xf]
    %v1051 = vld [vmem:[#allocation7 + $0x98] sm:$0xf]
    %v1052 = vld [vmem:[#allocation7 + $0x9c] sm:$0xf]
    %v1053 = vld [vmem:[#allocation7 + $0xa0] sm:$0xf]
    %v1054 = vld [vmem:[#allocation7 + $0xa4] sm:$0xf]
    %v1055 = vld [vmem:[#allocation7 + $0xa8] sm:$0xf]
    %v1056 = vld [vmem:[#allocation7 + $0xac] sm:$0xf]
    %v1057 = vld [vmem:[#allocation7 + $0xb0] sm:$0xf]
    %v1058 = vld [vmem:[#allocation7 + $0xb4] sm:$0xf]
    %v1059 = vld [vmem:[#allocation7 + $0xb8] sm:$0xf]
    %v1060 = vld [vmem:[#allocation7 + $0xbc] sm:$0xf]
    %v1061 = vld [vmem:[%s7] sm:$0x1]
    %v1063 = vperm.slane %v1061, 0
    %v1113 = vunpack.c.l.b16 %v1013
    %v1114 = vunpack.c.l.b16 %v1014
    %v1115 = vunpack.c.l.b16 %v1015
    %v1116 = vunpack.c.l.b16 %v1016
    %v1117 = vunpack.c.l.b16 %v1017
    %v1118 = vunpack.c.l.b16 %v1018
    %v1119 = vunpack.c.l.b16 %v1019
    %v1120 = vunpack.c.l.b16 %v1020
    %v1121 = vunpack.c.l.b16 %v1021
    %v1122 = vunpack.c.l.b16 %v1022
    %v1123 = vunpack.c.l.b16 %v1023
    %v1124 = vunpack.c.l.b16 %v1024
    %v1125 = vunpack.c.l.b16 %v1025
    %v1126 = vunpack.c.l.b16 %v1026
    %v1127 = vunpack.c.l.b16 %v1027
    %v1128 = vunpack.c.l.b16 %v1028
    %v1129 = vunpack.c.l.b16 %v1029
    %v1130 = vunpack.c.l.b16 %v1030
    %v1131 = vunpack.c.l.b16 %v1031
    %v1132 = vunpack.c.l.b16 %v1032
    %v1133 = vunpack.c.l.b16 %v1033
    %v1134 = vunpack.c.l.b16 %v1034
    %v1135 = vunpack.c.l.b16 %v1035
    %v1136 = vunpack.c.l.b16 %v1036
    %v1137 = vunpack.c.l.b16 %v1037
    %v1138 = vunpack.c.l.b16 %v1038
    %v1139 = vunpack.c.l.b16 %v1039
    %v1140 = vunpack.c.l.b16 %v1040
    %v1141 = vunpack.c.l.b16 %v1041
    %v1142 = vunpack.c.l.b16 %v1042
    %v1143 = vunpack.c.l.b16 %v1043
    %v1144 = vunpack.c.l.b16 %v1044
    %v1145 = vunpack.c.l.b16 %v1045
    %v1146 = vunpack.c.l.b16 %v1046
    %v1147 = vunpack.c.l.b16 %v1047
    %v1148 = vunpack.c.l.b16 %v1048
    %v1149 = vunpack.c.l.b16 %v1049
    %v1150 = vunpack.c.l.b16 %v1050
    %v1151 = vunpack.c.l.b16 %v1051
    %v1152 = vunpack.c.l.b16 %v1052
    %v1153 = vunpack.c.l.b16 %v1053
    %v1154 = vunpack.c.l.b16 %v1054
    %v1155 = vunpack.c.l.b16 %v1055
    %v1156 = vunpack.c.l.b16 %v1056
    %v1157 = vunpack.c.l.b16 %v1057
    %v1158 = vunpack.c.l.b16 %v1058
    %v1159 = vunpack.c.l.b16 %v1059
    %v1160 = vunpack.c.l.b16 %v1060
    %v1161 = vpack.c.b16 %v1114, %v1113
    %v1162 = vpack.c.b16 %v1116, %v1115
    %v1163 = vpack.c.b16 %v1118, %v1117
    %v1164 = vpack.c.b16 %v1120, %v1119
    %v1165 = vpack.c.b16 %v1122, %v1121
    %v1166 = vpack.c.b16 %v1124, %v1123
    %v1167 = vpack.c.b16 %v1126, %v1125
    %v1168 = vpack.c.b16 %v1128, %v1127
    %v1169 = vpack.c.b16 %v1130, %v1129
    %v1170 = vpack.c.b16 %v1132, %v1131
    %v1171 = vpack.c.b16 %v1134, %v1133
    %v1172 = vpack.c.b16 %v1136, %v1135
    %v1173 = vpack.c.b16 %v1138, %v1137
    %v1174 = vpack.c.b16 %v1140, %v1139
    %v1175 = vpack.c.b16 %v1142, %v1141
    %v1176 = vpack.c.b16 %v1144, %v1143
    %v1177 = vpack.c.b16 %v1146, %v1145
    %v1178 = vpack.c.b16 %v1148, %v1147
    %v1179 = vpack.c.b16 %v1150, %v1149
    %v1180 = vpack.c.b16 %v1152, %v1151
    %v1181 = vpack.c.b16 %v1154, %v1153
    %v1182 = vpack.c.b16 %v1156, %v1155
    %v1183 = vpack.c.b16 %v1158, %v1157
    %v1184 = vpack.c.b16 %v1160, %v1159
    %1209 = vmatpush.bf16.msra.mxu0 %v1168
    %1210 = vmatpush.bf16.msra.mxu0 %v1167
    %1211 = vmatpush.bf16.msra.mxu0 %v1166
    %1212 = vmatpush.bf16.msra.mxu0 %v1165
    %1213 = vmatpush.bf16.msra.mxu0 %v1164
    %1214 = vmatpush.bf16.msra.mxu0 %v1163
    %1215 = vmatpush.bf16.msra.mxu0 %v1162
    %1216 = vmatpush.bf16.msra.mxu0 %v1161
    %1217 = vmatmul.bf16.gmra.mxu0 %v1010
    %v1218 = vpop.f32.mrf.mxu0
    %v1219 = vadd.f32 %v1063, %v1218
    %v1220 = vpop.f32.mrf.mxu0
    %v1221 = vadd.f32 %v1063, %v1220
    %1222 = vdwg.mxu0
    %1223 = vmatpush.bf16.msra.mxu0 %v1176
    %1224 = vmatpush.bf16.msra.mxu0 %v1175
    %1225 = vmatpush.bf16.msra.mxu0 %v1174
    %1226 = vmatpush.bf16.msra.mxu0 %v1173
    %1227 = vmatpush.bf16.msra.mxu0 %v1172
    %1228 = vmatpush.bf16.msra.mxu0 %v1171
    %1229 = vmatpush.bf16.msra.mxu0 %v1170
    %1230 = vmatpush.bf16.msra.mxu0 %v1169
    %1231 = vmatmul.bf16.gmra.mxu0 %v1011
    %v1232 = vpop.f32.mrf.mxu0
    %v1233 = vadd.f32 %v1219, %v1232
    %v1234 = vpop.f32.mrf.mxu0
    %v1235 = vadd.f32 %v1221, %v1234
    %1236 = vdwg.mxu0
    %1237 = vmatpush.bf16.msra.mxu0 %v1184
    %1238 = vmatpush.bf16.msra.mxu0 %v1183
    %1239 = vmatpush.bf16.msra.mxu0 %v1182
    %1240 = vmatpush.bf16.msra.mxu0 %v1181
    %1241 = vmatpush.bf16.msra.mxu0 %v1180
    %1242 = vmatpush.bf16.msra.mxu0 %v1179
    %1243 = vmatpush.bf16.msra.mxu0 %v1178
    %1244 = vmatpush.bf16.msra.mxu0 %v1177
    %1245 = vmatmul.bf16.gmra.mxu0 %v1012
    %v1246 = vpop.f32.mrf.mxu0
    %v1247 = vadd.f32 %v1233, %v1246
    %v1248 = vpop.f32.mrf.mxu0
    %v1249 = vadd.f32 %v1235, %v1248
    %1250 = vdwg.mxu0
    %v1251 = vtanh.pop %v1247
    %v1252 = vtanh.pop %v1249
    %v1253 = vstv %s78
    %v1254 = vmul.f32 %v1253, %v1251
    %v1255 = vmul.f32 %v1253, %v1252
    %v1256 = vpack.c.bf16 %v1254, %v1254
    %v1257 = vpack.c.bf16 %v1255, %v1255
    %1258 = vst [vmem:[%s8] sm:$0xf] %v1256
    %1259 = vst [vmem:[%s8 + $0x4] sm:$0xf] %v1257
    // Predicated region
    $region46: #{actor_forward.1} parent=1 // pred_check
      _
    $region47: #{actor_forward.1} parent=1 // pred_check_branch
      %1261 = sbr.rel (0) target = $region49
    $region48: #{actor_forward.1} parent=1 // pred_region
      _
    $region49: #{actor_forward.1} parent=1 // pred_fallthru
      _
    // Predicated region
    $region50: #{actor_forward.1} parent=1 // pred_check
      _
    $region51: #{actor_forward.1} parent=1 // pred_check_branch
      %1263 = sbr.rel (0) target = $region53
    $region52: #{actor_forward.1} parent=1 // pred_region
      _
    $region53: #{actor_forward.1} parent=1 // pred_fallthru
      _
    %1264 = vsyncpa [#allocation4], 1
    %1265 = vsyncpa [#allocation6], 1

</llo_original>
